<compile_context>
chip_gen: v7x
topology: tpu7x:2x2x1
jax: 0.10.0
libtpu: 0.0.40
codegen_flags: <defaults>
</compile_context>

<pallas_src>
import jax
import jax.numpy as jnp
from jax.experimental import pallas as pl
from jax.experimental.pallas import tpu as pltpu


def _copy_kernel(x_ref, o_ref):
    # Lane-dense full-tile copy; the reshape itself is done (for free) in the
    # wrapper, so the input and output tiles are layout-identical.
    o_ref[...] = x_ref[...]


def _sublane_multiple(dtype):
    itemsize = jnp.dtype(dtype).itemsize
    return max(8, 32 // itemsize)  # 8 (f32), 16 (bf16), 32 (int8/fp8)


def _choose_lanes(total):
    """Pick a lane width that divides `total`, preferring multiples of 128."""
    for lanes in (2048, 1024, 512, 256, 128):
        if total % lanes == 0:
            return lanes
    # No multiple of 128 divides `total`; fall back to the largest divisor
    # <= 2048.  The block's last dim still equals the array's last dim, so
    # lowering stays legal (just not perfectly lane-aligned).
    for lanes in range(min(total, 2048), 0, -1):
        if total % lanes == 0:
            return lanes
    return total


def _choose_tile_rows(rows, lanes, dtype, target_bytes=2 << 20):
    """Rows per grid step: ~2 MiB tiles, sublane-aligned, dividing `rows`."""
    itemsize = jnp.dtype(dtype).itemsize
    max_rows = max(1, target_bytes // (lanes * itemsize))
    if rows <= max_rows:
        return rows  # whole array in one block (block == full dims is legal)
    sub = _sublane_multiple(dtype)
    cand = max_rows - (max_rows % sub)
    while cand >= sub:
        if rows % cand == 0:
            return cand
        cand -= sub
    # No sublane-aligned divisor small enough; use the full extent (legal
    # because block == full dim; may exceed the 2 MiB target but stays within
    # the raised VMEM limit for realistic shapes).
    return rows


def patches_t(images, patch_size):
    """Pallas implementation of PatchesT.forward."""
    B, C, H, W = images.shape
    assert (H * W) % patch_size == 0, "H*W must be divisible by patch_size"
    N = (H * W) // patch_size
    P = patch_size
    total = B * C * H * W

    lanes = _choose_lanes(total)
    rows = total // lanes
    tile_rows = _choose_tile_rows(rows, lanes, images.dtype)
    grid = (rows // tile_rows,)

    # Free metadata reshape: present the kernel a lane-dense 2-D view.
    x2d = jnp.reshape(images, (rows, lanes))

    out2d = pl.pallas_call(
        _copy_kernel,
        out_shape=jax.ShapeDtypeStruct((rows, lanes), images.dtype),
        grid=grid,
        in_specs=[pl.BlockSpec((tile_rows, lanes), lambda i: (i, 0))],
        out_specs=pl.BlockSpec((tile_rows, lanes), lambda i: (i, 0)),
        compiler_params=pltpu.CompilerParams(
            dimension_semantics=("parallel",),
            # 2 in + 2 out double-buffered tiles of <=2 MiB each -> <=8 MiB;
            # raise the scoped limit (v5e default is 16 MiB) with headroom,
            # while staying well under v7x's 64 MiB physical VMEM.
            vmem_limit_bytes=32 * 1024 * 1024,
        ),
    )(x2d)

    # Free metadata reshape back to the module's output shape.
    return jnp.reshape(out2d, (B, C, N, P))


if __name__ == "__main__":
    # Small shapes consistent with the module's forward:
    # batch=2, channels=4, spatial=16x16, patch_size=8 -> patches (2, 4, 32, 8)
    B, C, H, W = 2, 4, 16, 16
    patch_size = 8  # module default is 100; use a small value matching H*W

    key = jax.random.PRNGKey(0)
    images = jax.random.normal(key, (B, C, H, W), dtype=jnp.float32)

    out = patches_t(images, patch_size)
    out = jax.block_until_ready(out)

    # Reference: the pure-JAX equivalent of torch .view()
    ref = jnp.reshape(images, (B, C, H * W // patch_size, patch_size))

    assert out.shape == (B, C, H * W // patch_size, patch_size), out.shape
    assert out.dtype == images.dtype
    assert jnp.array_equal(out, ref), "mismatch vs reference reshape"

    print("KERNEL_OK")
</pallas_src>

<mosaic_0001>
module attributes {stable_mosaic.version = 11 : i64} {
  func.func @_copy_kernel(%arg0: i32, %arg1: memref<1x2048xf32, #tpu.memory_space<vmem>>, %arg2: memref<1x2048xf32, #tpu.memory_space<vmem>>) attributes {dimension_semantics = [#tpu.dimension_semantics<parallel>], iteration_bounds = array<i64: 1>, scalar_prefetch = 0 : i64, scratch_operands = 0 : i64, tpu.core_type = #tpu.core_type<tc>, window_params = [{transform_indices = @transform_0, window_bounds = array<i64: 1, 2048>}, {transform_indices = @transform_1, window_bounds = array<i64: 1, 2048>}]} {
    %c0 = arith.constant 0 : index
    %c0_0 = arith.constant 0 : index
    %0 = vector.load %arg1[%c0, %c0_0] : memref<1x2048xf32, #tpu.memory_space<vmem>>, vector<1x2048xf32>
    %c0_1 = arith.constant 0 : index
    %c0_2 = arith.constant 0 : index
    %1 = vector.load %arg2[%c0_1, %c0_2] : memref<1x2048xf32, #tpu.memory_space<vmem>>, vector<1x2048xf32>
    tpu.vector_store %arg2[%c0_1, %c0_2], %0 {strides = array<i32>} : memref<1x2048xf32, #tpu.memory_space<vmem>>, vector<1x2048xf32>,
    return
  }
  func.func @transform_0(%arg0: i32) -> (i32, i32) {
    %c0_i32 = arith.constant 0 : i32
    %c0_i32_0 = arith.constant 0 : i32
    return %arg0, %c0_i32 : i32, i32
  }
  func.func @transform_1(%arg0: i32) -> (i32, i32) {
    %c0_i32 = arith.constant 0 : i32
    %c0_i32_0 = arith.constant 0 : i32
    return %arg0, %c0_i32 : i32, i32
  }
}

</mosaic_0001>

<llo_original>
// kernel: tpu_custom_call.1
$region0: #{tpu_custom_call.1}
  #allocation0 [shape = 'u32[]', space=smem, size = 0x4, offset = 0x4, fixed_abs, tag = 'smem constant byte address 0x4 - core index']
  #allocation1 [shape = 'u32[144,128]{1,0:T(1,128)}', space=vmem, size = 0x12000, scoped, tag = 'internal scratch']
  %s0 = inlined_call_operand.hbm [shape: f32[1,2048], index: 0, kind: input, shape index: {}]
  %s1 = inlined_call_operand.hbm [shape: f32[1,2048], index: 1, kind: output, shape index: {}]
  %s2 = sld [smem:[#allocation0]]
  $region18: #{tpu_custom_call.1} parent=0
    _
  %s4 = ssub.s32 1, %s2
  %s5 = scalar_select 0, %s4, %s2
  $region1: #{tpu_custom_call.1} parent=0
    #allocation2 [shape = 'u8[8192]{0}', space=vmem, size = 0x2000, scoped, tag = 'input window, operand 0, single buffered']
    #allocation3 [shape = 's32[1]{0}', space=sflag, size = 0x4, scoped, tag = 'scoped memory for tpu_custom_call.1']
    #allocation4 [shape = 's32[1]{0}', space=sflag, size = 0x4, scoped, tag = 'scoped memory for tpu_custom_call.1']
    #allocation5 [shape = 'u8[8192]{0}', space=vmem, size = 0x2000, scoped, tag = 'output window, operand 0, single buffered']
    %6 = vsyncpa [#allocation3], 0
    %7 = vsyncpa [#allocation4], 0
    // Predicated region
    $region2: #{tpu_custom_call.1} parent=1 // pred_check
      _
    $region3: #{tpu_custom_call.1} parent=1 // pred_check_branch
      %9 = sbr.rel (0) target = $region5
    $region4: #{tpu_custom_call.1} parent=1 // pred_region
      %s11 = ssub.s32 256, 256
      %12 = vsyncadd [#allocation3], %s11
      %s14 = sshll.u32 [#allocation2], 4
      %s15 = int_to_ptr.vmem [resolvable:$true] %s14
      %17 = dma.hbm_to_vmem [thread:$0]  %s0, 256, %s15, [#allocation3]
    $region5: #{tpu_custom_call.1} parent=1 // pred_fallthru
      _
    // Predicated region
    $region6: #{tpu_custom_call.1} parent=1 // pred_check
      _
    $region7: #{tpu_custom_call.1} parent=1 // pred_check_branch
      %19 = sbr.rel (0) target = $region9
    $region8: #{tpu_custom_call.1} parent=1 // pred_region
      %20 = dma.done [#allocation3], 256
    $region9: #{tpu_custom_call.1} parent=1 // pred_fallthru
      _
    %v21 = vld [vmem:[#allocation2] sm:$0xff]
    %v22 = vld [vmem:[#allocation2 + $0x8] sm:$0xff]
    %23 = vst [vmem:[#allocation5] sm:$0xff] %v21
    %24 = vst [vmem:[#allocation5 + $0x8] sm:$0xff] %v22
    // Predicated region
    $region10: #{tpu_custom_call.1} parent=1 // pred_check
      _
    $region11: #{tpu_custom_call.1} parent=1 // pred_check_branch
      %26 = sbr.rel (0) target = $region13
    $region12: #{tpu_custom_call.1} parent=1 // pred_region
      %s28 = ssub.s32 256, 256
      %29 = vsyncadd [#allocation4], %s28
      %s31 = sshll.u32 [#allocation5], 4
      %s32 = int_to_ptr.vmem [resolvable:$true] %s31
      %34 = dma.vmem_to_hbm [thread:$0]  %s32, 256, %s1, [#allocation4]
    $region13: #{tpu_custom_call.1} parent=1 // pred_fallthru
      _
    // Predicated region
    $region14: #{tpu_custom_call.1} parent=1 // pred_check
      _
    $region15: #{tpu_custom_call.1} parent=1 // pred_check_branch
      %36 = sbr.rel (0) target = $region17
    $region16: #{tpu_custom_call.1} parent=1 // pred_region
      %37 = dma.done [#allocation4], 256
    $region17: #{tpu_custom_call.1} parent=1 // pred_fallthru
      _
    %38 = vsyncpa [#allocation3], 1
    %39 = vsyncpa [#allocation4], 1

</llo_original>
